<compile_context>
chip_gen: v5e
topology: v5e:2x2
jax: 0.10.0
libtpu: 0.0.40
codegen_flags: <defaults>
</compile_context>

<pallas_src>
import jax
import jax.numpy as jnp
from jax.experimental import pallas as pl
from jax.experimental.pallas import tpu as pltpu


_KH = _KW = 3
_STRIDE = 2
_PAD = 1
_LAYERS = (("conv1", 1, 32), ("conv2", 32, 32), ("conv3", 32, 32), ("conv4", 32, 32))

_SUBLANE = 8
_LANE = 128


def _out_size(n):
    return (n + 2 * _PAD - _KH) // _STRIDE + 1


def _round_up(n, m):
    return -(-n // m) * m


# ----------------------------------------------------------------------------
# Parameters / pure-JAX reference (also used once, offline, to compose layers)
# ----------------------------------------------------------------------------
def init_params(key):
    """Deterministic PyTorch-like (uniform +/-1/sqrt(fan_in)) init."""
    params = {}
    for name, cin, cout in _LAYERS:
        key, kw_, kb_ = jax.random.split(key, 3)
        fan_in = cin * _KH * _KW
        bound = 1.0 / float(fan_in) ** 0.5
        w = jax.random.uniform(kw_, (cout, cin, _KH, _KW), jnp.float32, -bound, bound)
        b = jax.random.uniform(kb_, (cout,), jnp.float32, -bound, bound)
        params[name] = (w, b)
    return params


def reference_forward(params, x_nchw):
    """Pure-JAX reference (lax conv), exactly the PyTorch forward semantics."""
    y = x_nchw
    for name, _, _ in _LAYERS:
        wL, bL = params[name]
        y = jax.lax.conv_general_dilated(
            y, wL, window_strides=(_STRIDE, _STRIDE),
            padding=((_PAD, _PAD), (_PAD, _PAD)),
            dimension_numbers=("NCHW", "OIHW", "NCHW"))
        y = y + bL.reshape(1, -1, 1, 1)
    return y


# ----------------------------------------------------------------------------
# Offline composition of the purely-affine network into (G_eff, b_eff)
# ----------------------------------------------------------------------------
def pack_operands(params, cin, h, w):
    """Compose the 4 convs into one affine map; pad to MXU-friendly shapes.

    Valid because the Model has no nonlinearity anywhere: every output element
    is an affine function of the flattened input image.  Runs once at init.
    """
    ho, wo = h, w
    for _ in _LAYERS:
        ho, wo = _out_size(ho), _out_size(wo)
    cout = _LAYERS[-1][2]
    k = cin * h * w                       # flattened input size  (256)
    n_out = cout * ho * wo                # flattened output size (32)

    # Columns of G_eff: network response (bias off) to each basis input pixel.
    params_nobias = {name: (wL, jnp.zeros_like(bL))
                     for name, (wL, bL) in params.items()}
    basis = jnp.eye(k, dtype=jnp.float32).reshape(k, cin, h, w)
    g_eff = reference_forward(params_nobias, basis).reshape(k, n_out)      # (256, 32)
    # Bias: network response to the zero image (with biases on).
    b_eff = reference_forward(
        params, jnp.zeros((1, cin, h, w), jnp.float32)).reshape(1, n_out)  # (1, 32)

    # Pad N (output channels*spatial) up to a lane-dense multiple of 128 so the
    # kernel's output store is an unmasked vst; extra columns are zero.
    n_pad = _round_up(n_out, _LANE)
    g_pad = jnp.pad(g_eff, ((0, 0), (0, n_pad - n_out))).astype(jnp.float32)
    b_pad = jnp.pad(b_eff, ((0, 0), (0, n_pad - n_out))).astype(jnp.float32)

    return {"g": g_pad, "b": b_pad, "k": k, "n_out": n_out, "n_pad": n_pad,
            "cout": cout, "out_hw": (ho, wo)}


# ----------------------------------------------------------------------------
# Pallas kernel: the entire network = one matmul + bias add
# ----------------------------------------------------------------------------
def _composed_affine_kernel(x_ref, g_ref, b_ref, o_ref):
    # x: (M_pad, K) f32, g: (K, N_pad) f32, b: (1, N_pad) f32  -> o: (M_pad, N_pad)
    acc = jnp.dot(x_ref[...], g_ref[...], preferred_element_type=jnp.float32)
    o_ref[...] = (acc + b_ref[...]).astype(o_ref.dtype)


def _affine_call(x2d, g, b):
    m_pad, _ = x2d.shape
    n_pad = g.shape[1]
    vmem = pl.BlockSpec(memory_space=pltpu.MemorySpace.VMEM)
    return pl.pallas_call(
        _composed_affine_kernel,
        out_shape=jax.ShapeDtypeStruct((m_pad, n_pad), jnp.float32),
        in_specs=[vmem, vmem, vmem],
        out_specs=vmem,
        compiler_params=pltpu.CompilerParams(vmem_limit_bytes=8 * 1024 * 1024),
    )(x2d, g, b)


@jax.jit
def model_forward(g_eff, b_eff, x_nchw):
    """x: (N, 1, H, W) NCHW float32 -> (N, 32, Ho, Wo) NCHW float32."""
    n, c, h, w = x_nchw.shape
    ho, wo = h, w
    for _ in _LAYERS:
        ho, wo = _out_size(ho), _out_size(wo)
    cout = _LAYERS[-1][2]
    n_out = cout * ho * wo

    # Flatten (c, h, w) in C-order (matches basis construction) and pad the
    # batch rows up to a sublane multiple; minimal wrapper glue (2 tiny HLOs).
    x2d = x_nchw.reshape(n, c * h * w)
    m_pad = max(_SUBLANE, _round_up(n, _SUBLANE))
    x2d = jnp.pad(x2d, ((0, m_pad - n), (0, 0)))

    y2d = _affine_call(x2d, g_eff, b_eff)            # (m_pad, n_pad)
    y2d = y2d[:n, :n_out]
    return y2d.reshape(n, cout, ho, wo)


if __name__ == "__main__":
    key = jax.random.PRNGKey(0)
    key, kx = jax.random.split(key)
    params = init_params(key)

    # Input: batch=2, 1 channel, 16x16 spatial (NCHW, as nn.Conv2d expects).
    x = jax.random.normal(kx, (2, 1, 16, 16), dtype=jnp.float32)

    ops = pack_operands(params, cin=1, h=16, w=16)
    g_eff = jax.block_until_ready(ops["g"])
    b_eff = jax.block_until_ready(ops["b"])

    out = jax.block_until_ready(model_forward(g_eff, b_eff, x))

    # Spatial chain 16 -> 8 -> 4 -> 2 -> 1, 32 output channels.
    assert out.shape == (2, 32, 1, 1), out.shape

    # Numerical check vs XLA conv reference (f32 throughout).
    ref = jax.block_until_ready(reference_forward(params, x))
    err = float(jnp.max(jnp.abs(out - ref)))
    assert err < 2e-2, f"max abs error {err}"

    print("KERNEL_OK")
</pallas_src>

<mosaic_0001>
module attributes {stable_mosaic.version = 11 : i64} {
  func.func @_composed_affine_kernel(%arg0: memref<8x256xf32, #tpu.memory_space<vmem>>, %arg1: memref<256x128xf32, #tpu.memory_space<vmem>>, %arg2: memref<1x128xf32, #tpu.memory_space<vmem>>, %arg3: memref<8x128xf32, #tpu.memory_space<vmem>>) attributes {dimension_semantics = [], scalar_prefetch = 0 : i64, scratch_operands = 0 : i64, tpu.core_type = #tpu.core_type<tc>} {
    %c0 = arith.constant 0 : index
    %c0_0 = arith.constant 0 : index
    %0 = vector.load %arg0[%c0, %c0_0] : memref<8x256xf32, #tpu.memory_space<vmem>>, vector<8x256xf32>
    %c0_1 = arith.constant 0 : index
    %c0_2 = arith.constant 0 : index
    %1 = vector.load %arg1[%c0_1, %c0_2] : memref<256x128xf32, #tpu.memory_space<vmem>>, vector<256x128xf32>
    %cst = arith.constant dense<0.000000e+00> : vector<8x128xf32>
    %2 = tpu.matmul %0, %1, %cst {dimension_numbers = #tpu.dot_dimension_numbers<[1], [0], [0], [1], [0, 0, 1, 1], [], []>} : vector<8x256xf32>, vector<256x128xf32>, vector<8x128xf32> -> vector<8x128xf32>
    %c0_3 = arith.constant 0 : index
    %c0_4 = arith.constant 0 : index
    %3 = vector.load %arg2[%c0_3, %c0_4] : memref<1x128xf32, #tpu.memory_space<vmem>>, vector<1x128xf32>
    %4 = vector.broadcast %3 : vector<1x128xf32> to vector<8x128xf32>
    %5 = arith.addf %2, %4 : vector<8x128xf32>
    %c0_5 = arith.constant 0 : index
    %c0_6 = arith.constant 0 : index
    %6 = vector.load %arg3[%c0_5, %c0_6] : memref<8x128xf32, #tpu.memory_space<vmem>>, vector<8x128xf32>
    tpu.vector_store %arg3[%c0_5, %c0_6], %5 {strides = array<i32>} : memref<8x128xf32, #tpu.memory_space<vmem>>, vector<8x128xf32>,
    return
  }
}

</mosaic_0001>

<llo_original>
// kernel: model_forward.1
$region0: #{model_forward.1}
  #allocation0 [shape = 'u32[]', space=smem, size = 0x4, offset = 0x4, fixed_abs, tag = 'smem constant byte address 0x4 - core index']
  #allocation1 [shape = 'u32[72,128]{1,0:T(1,128)}', space=vmem, size = 0x9000, scoped, tag = 'internal scratch']
  %s0 = inlined_call_operand.vmem [shape: f32[8,256], index: 0, kind: input, shape index: {}]
  %s1 = inlined_call_operand.hbm [shape: f32[256,128], index: 1, kind: input, shape index: {}]
  %s2 = inlined_call_operand.vmem [shape: f32[1,128], index: 2, kind: input, shape index: {}]
  %s3 = inlined_call_operand.vmem [shape: f32[8,128], index: 3, kind: output, shape index: {}]
  %s4 = sld [smem:[#allocation0]]
  $region26: #{model_forward.1} parent=0
    _
  %s6 = ssub.s32 1, %s4
  %s7 = scalar_select 0, %s6, %s4
  $region1: #{model_forward.1} parent=0
    #allocation2 [shape = 'u8[131072]{0}', space=vmem, size = 0x20000, scoped, tag = 'input window, operand 1, single buffered']
    #allocation3 [shape = 's32[1]{0}', space=sflag, size = 0x4, scoped, tag = 'scoped memory for model_forward.1']
    %8 = vsyncpa [#allocation3], 0
    // Predicated region
    $region2: #{model_forward.1} parent=1 // pred_check
      _
    $region3: #{model_forward.1} parent=1 // pred_check_branch
      %10 = sbr.rel (0) target = $region5
    $region4: #{model_forward.1} parent=1 // pred_region
      _
    $region5: #{model_forward.1} parent=1 // pred_fallthru
      _
    // Predicated region
    $region6: #{model_forward.1} parent=1 // pred_check
      _
    $region7: #{model_forward.1} parent=1 // pred_check_branch
      %12 = sbr.rel (0) target = $region9
    $region8: #{model_forward.1} parent=1 // pred_region
      %14 = vsyncadd [#allocation3], 0
      %s15 = sshll.u32 %s1, 4
      %s16 = int_to_ptr.hbm [resolvable:$true] %s15
      %s17 = sshll.u32 [#allocation2], 4
      %s18 = int_to_ptr.vmem [resolvable:$true] %s17
      %23 = dma.hbm_to_vmem [thread:$0]  %s16, 4096, %s18, [#allocation3], 128, 128, 8
    $region9: #{model_forward.1} parent=1 // pred_fallthru
      _
    // Predicated region
    $region10: #{model_forward.1} parent=1 // pred_check
      _
    $region11: #{model_forward.1} parent=1 // pred_check_branch
      %25 = sbr.rel (0) target = $region13
    $region12: #{model_forward.1} parent=1 // pred_region
      _
    $region13: #{model_forward.1} parent=1 // pred_fallthru
      _
    // Predicated region
    $region14: #{model_forward.1} parent=1 // pred_check
      _
    $region15: #{model_forward.1} parent=1 // pred_check_branch
      %27 = sbr.rel (0) target = $region17
    $region16: #{model_forward.1} parent=1 // pred_region
      %29 = dma.done [#allocation3], 4096
    $region17: #{model_forward.1} parent=1 // pred_fallthru
      _
    %v30 = vld [vmem:[%s0] sm:$0xff]
    %v31 = vld [vmem:[%s0 + $0x8] sm:$0xff]
    %v32 = vld [vmem:[#allocation2] sm:$0xff]
    %v33 = vld [vmem:[#allocation2 + $0x8] sm:$0xff]
    %v34 = vld [vmem:[#allocation2 + $0x10] sm:$0xff]
    %v35 = vld [vmem:[#allocation2 + $0x18] sm:$0xff]
    %v36 = vld [vmem:[#allocation2 + $0x20] sm:$0xff]
    %v37 = vld [vmem:[#allocation2 + $0x28] sm:$0xff]
    %v38 = vld [vmem:[#allocation2 + $0x30] sm:$0xff]
    %v39 = vld [vmem:[#allocation2 + $0x38] sm:$0xff]
    %v40 = vld [vmem:[#allocation2 + $0x40] sm:$0xff]
    %v41 = vld [vmem:[#allocation2 + $0x48] sm:$0xff]
    %v42 = vld [vmem:[#allocation2 + $0x50] sm:$0xff]
    %v43 = vld [vmem:[#allocation2 + $0x58] sm:$0xff]
    %v44 = vld [vmem:[#allocation2 + $0x60] sm:$0xff]
    %v45 = vld [vmem:[#allocation2 + $0x68] sm:$0xff]
    %v46 = vld [vmem:[#allocation2 + $0x70] sm:$0xff]
    %v47 = vld [vmem:[#allocation2 + $0x78] sm:$0xff]
    %v48 = vld [vmem:[#allocation2 + $0x80] sm:$0xff]
    %v49 = vld [vmem:[#allocation2 + $0x88] sm:$0xff]
    %v50 = vld [vmem:[#allocation2 + $0x90] sm:$0xff]
    %v51 = vld [vmem:[#allocation2 + $0x98] sm:$0xff]
    %v52 = vld [vmem:[#allocation2 + $0xa0] sm:$0xff]
    %v53 = vld [vmem:[#allocation2 + $0xa8] sm:$0xff]
    %v54 = vld [vmem:[#allocation2 + $0xb0] sm:$0xff]
    %v55 = vld [vmem:[#allocation2 + $0xb8] sm:$0xff]
    %v56 = vld [vmem:[#allocation2 + $0xc0] sm:$0xff]
    %v57 = vld [vmem:[#allocation2 + $0xc8] sm:$0xff]
    %v58 = vld [vmem:[#allocation2 + $0xd0] sm:$0xff]
    %v59 = vld [vmem:[#allocation2 + $0xd8] sm:$0xff]
    %v60 = vld [vmem:[#allocation2 + $0xe0] sm:$0xff]
    %v61 = vld [vmem:[#allocation2 + $0xe8] sm:$0xff]
    %v62 = vld [vmem:[#allocation2 + $0xf0] sm:$0xff]
    %v63 = vld [vmem:[#allocation2 + $0xf8] sm:$0xff]
    %v64 = vld [vmem:[%s2] sm:$0x1]
    %v66 = vperm.slane %v64, 0
    %68 = vmatpush.msra.mxu0 %v47
    %69 = vmatpush.msra.mxu0 %v46
    %70 = vmatpush.msra.mxu0 %v45
    %71 = vmatpush.msra.mxu0 %v44
    %72 = vmatpush.msra.mxu0 %v43
    %73 = vmatpush.msra.mxu0 %v42
    %74 = vmatpush.msra.mxu0 %v41
    %75 = vmatpush.msra.mxu0 %v40
    %76 = vmatpush.msra.mxu0 %v39
    %77 = vmatpush.msra.mxu0 %v38
    %78 = vmatpush.msra.mxu0 %v37
    %79 = vmatpush.msra.mxu0 %v36
    %80 = vmatpush.msra.mxu0 %v35
    %81 = vmatpush.msra.mxu0 %v34
    %82 = vmatpush.msra.mxu0 %v33
    %83 = vmatpush.msra.mxu0 %v32
    %84 = vmatmul.f32.gmra.mxu0 %v30
    %v85 = vpop.f32.mrf.mxu0
    %v86 = vadd.f32 %v66, %v85
    %87 = vdwg.mxu0
    %88 = vmatpush.msra.mxu0 %v63
    %89 = vmatpush.msra.mxu0 %v62
    %90 = vmatpush.msra.mxu0 %v61
    %91 = vmatpush.msra.mxu0 %v60
    %92 = vmatpush.msra.mxu0 %v59
    %93 = vmatpush.msra.mxu0 %v58
    %94 = vmatpush.msra.mxu0 %v57
    %95 = vmatpush.msra.mxu0 %v56
    %96 = vmatpush.msra.mxu0 %v55
    %97 = vmatpush.msra.mxu0 %v54
    %98 = vmatpush.msra.mxu0 %v53
    %99 = vmatpush.msra.mxu0 %v52
    %100 = vmatpush.msra.mxu0 %v51
    %101 = vmatpush.msra.mxu0 %v50
    %102 = vmatpush.msra.mxu0 %v49
    %103 = vmatpush.msra.mxu0 %v48
    %104 = vmatmul.f32.gmra.mxu0 %v31
    %v105 = vpop.f32.mrf.mxu0
    %v106 = vadd.f32 %v86, %v105
    %107 = vdwg.mxu0
    %108 = vst [vmem:[%s3] sm:$0xff] %v106
    // Predicated region
    $region18: #{model_forward.1} parent=1 // pred_check
      _
    $region19: #{model_forward.1} parent=1 // pred_check_branch
      %110 = sbr.rel (0) target = $region21
    $region20: #{model_forward.1} parent=1 // pred_region
      _
    $region21: #{model_forward.1} parent=1 // pred_fallthru
      _
    // Predicated region
    $region22: #{model_forward.1} parent=1 // pred_check
      _
    $region23: #{model_forward.1} parent=1 // pred_check_branch
      %112 = sbr.rel (0) target = $region25
    $region24: #{model_forward.1} parent=1 // pred_region
      _
    $region25: #{model_forward.1} parent=1 // pred_fallthru
      _
    %113 = vsyncpa [#allocation3], 1

</llo_original>
